<compile_context>
chip_gen: v7x
topology: tpu7x:2x2x1
jax: 0.10.0
libtpu: 0.0.40
codegen_flags: <defaults>
</compile_context>

<pallas_src>
import jax
import jax.numpy as jnp
from jax.experimental import pallas as pl
from jax.experimental.pallas import tpu as pltpu

INPUT_SIZE = 2
HIDDEN_SIZE = 8
OUT_SIZE = INPUT_SIZE * 2  # Linear(HIDDEN_SIZE, 4)


def _lstm_kernel(gx_ref, whh_ref, outw_ref, out_ref, h_scr):
    """Serial LSTM recurrence over precomputed input-side gates + hoisted output Linear.

    gx_ref:   (T, B, 4H)  time-major, x @ W_ih^T + (b_ih + b_hh), gate order (i, f, o, g)
    whh_ref:  (H, 4H)     recurrent weight W_hh^T, gate order (i, f, o, g)
    outw_ref: (H+1, OUT)  rows 0..H-1: hidden_out.weight^T, row H: hidden_out.bias
    out_ref:  (T, B, OUT) time-major output (wrapper transposes back to batch-first)
    h_scr:    (T*B, H)    VMEM scratch for per-step hidden states (time-major rows)
    """
    T, B, _ = gx_ref.shape
    H = HIDDEN_SIZE

    # Hoist every loop-invariant load out of the serial recurrence (all a few KB).
    gx = gx_ref[...]       # (T, B, 4H)
    whh = whh_ref[...]     # (H, 4H) loop-invariant RHS; static unroll lets Mosaic
                           # hoist the MXU weight push across steps.
    # TODO(synk): if a bundle dump shows the RHS being re-pushed every step, drive the
    # MXU explicitly with pltpu.matmul_push_rhs / matmul_acc_lhs / matmul_pop.

    h = jnp.zeros((B, H), jnp.float32)
    c = jnp.zeros((B, H), jnp.float32)

    # T is a compile-time constant: static unroll gives the scheduler full
    # cross-iteration visibility and removes per-step loop overhead.
    # TODO(synk): switch to lax.fori_loop(..., unroll=4..8) if T grows past ~64.
    for t in range(T):
        # Per-step critical path: one (B, H) @ (H, 4H) MXU push + VPU/EUP gate math.
        gates = gx[t] + jnp.dot(h, whh, preferred_element_type=jnp.float32)  # (B, 4H)
        sig = jax.nn.sigmoid(gates[:, : 3 * H])      # i, f, o in one contiguous pass
        g_g = jnp.tanh(gates[:, 3 * H:])             # g
        i_g = sig[:, 0:H]
        f_g = sig[:, H:2 * H]
        o_g = sig[:, 2 * H:3 * H]
        c = f_g * c + i_g * g_g
        h = o_g * jnp.tanh(c)
        # Plain contiguous store at a static offset; no stack/reshape epilogue.
        h_scr[pl.ds(t * B, B), :] = h

    # Output projection hoisted off the recurrence: one (T*B, H) @ (H, OUT) matmul,
    # bias folded from the packed operand's last row.
    wp = outw_ref[...]                                        # (H+1, OUT)
    y = (jnp.dot(h_scr[...], wp[:H, :], preferred_element_type=jnp.float32)
         + wp[H:H + 1, :])                                    # (T*B, OUT)
    out_ref[...] = y.reshape(T, B, OUT_SIZE).astype(out_ref.dtype)


def _reorder_gates(a, H):
    # PyTorch gate block order (i, f, g, o) -> (i, f, o, g) along the leading 4H axis.
    return jnp.concatenate([a[: 2 * H], a[3 * H:], a[2 * H: 3 * H]], axis=0)


@jax.jit
def lstm_forward(x, params):
    """x: (B, T, INPUT_SIZE) float32 -> (B, T, 2*INPUT_SIZE) float32."""
    w_ih, w_hh, b_ih, b_hh, w_out, b_out = params
    B, T, _ = x.shape
    H = HIDDEN_SIZE

    w_ih_r = _reorder_gates(w_ih, H)              # (4H, I), gate order (i, f, o, g)
    w_hh_r = _reorder_gates(w_hh, H)              # (4H, H)
    b_r = _reorder_gates(b_ih + b_hh, H)          # (4H,)

    # Hoist the loop-invariant input-side projection out of the serial recurrence:
    # one batched XLA matmul, time-major, bias fused.  The kernel only does h @ W_hh.
    x_tm = jnp.transpose(x, (1, 0, 2))            # (T, B, I)
    gates_x = jnp.dot(x_tm, w_ih_r.T) + b_r       # (T, B, 4H)

    whh_t = w_hh_r.T                              # (H, 4H)
    # Pack the output Linear weight + bias into one operand (fewer tiny DMAs).
    out_pack = jnp.concatenate([w_out.T, b_out.reshape(1, OUT_SIZE)], axis=0)  # (H+1, OUT)

    vmem = pl.BlockSpec(memory_space=pltpu.MemorySpace.VMEM)
    y_tm = pl.pallas_call(
        _lstm_kernel,
        out_shape=jax.ShapeDtypeStruct((T, B, OUT_SIZE), jnp.float32),
        in_specs=[vmem, vmem, vmem],
        out_specs=vmem,
        scratch_shapes=[pltpu.VMEM((T * B, HIDDEN_SIZE), jnp.float32)],
        # Single invocation, no grid: at B=2, T=8 the kernel is latency-bound on the
        # serial recurrence; tiling/pipelining would only add per-step overhead.
        # TODO(synk): if B grows (v7x: 2 TCs, 64 MiB VMEM), add a leading batch grid
        # axis with dimension_semantics=("parallel", ...) and T-chunked pipelining.
    )(gates_x, whh_t, out_pack)

    # One-time cheap transpose of the tiny time-major output back to batch-first.
    return jnp.transpose(y_tm, (1, 0, 2))         # (B, T, OUT)


def init_params(key):
    """Deterministic init matching PyTorch parameter shapes (uniform +-1/sqrt(H))."""
    H, I = HIDDEN_SIZE, INPUT_SIZE
    k = 1.0 / jnp.sqrt(jnp.float32(H))
    keys = jax.random.split(key, 6)
    w_ih = jax.random.uniform(keys[0], (4 * H, I), jnp.float32, -k, k)      # weight_ih_l0
    w_hh = jax.random.uniform(keys[1], (4 * H, H), jnp.float32, -k, k)      # weight_hh_l0
    b_ih = jax.random.uniform(keys[2], (4 * H,), jnp.float32, -k, k)        # bias_ih_l0
    b_hh = jax.random.uniform(keys[3], (4 * H,), jnp.float32, -k, k)        # bias_hh_l0
    w_out = jax.random.uniform(keys[4], (OUT_SIZE, H), jnp.float32, -k, k)  # hidden_out.weight
    b_out = jax.random.uniform(keys[5], (OUT_SIZE,), jnp.float32, -k, k)    # hidden_out.bias
    return (w_ih, w_hh, b_ih, b_hh, w_out, b_out)


def lstm_forward_ref(x, params):
    """Pure-JAX reference replicating PyTorch nn.LSTM + Linear semantics."""
    w_ih, w_hh, b_ih, b_hh, w_out, b_out = params
    B, T, _ = x.shape
    H = HIDDEN_SIZE
    h0 = jnp.zeros((B, H), jnp.float32)
    c0 = jnp.zeros((B, H), jnp.float32)

    def step(carry, x_t):
        h, c = carry
        gates = x_t @ w_ih.T + b_ih + h @ w_hh.T + b_hh     # (B, 4H), order i, f, g, o
        i_g = jax.nn.sigmoid(gates[:, 0:H])
        f_g = jax.nn.sigmoid(gates[:, H:2 * H])
        g_g = jnp.tanh(gates[:, 2 * H:3 * H])
        o_g = jax.nn.sigmoid(gates[:, 3 * H:4 * H])
        c_new = f_g * c + i_g * g_g
        h_new = o_g * jnp.tanh(c_new)
        return (h_new, c_new), h_new

    _, hs = jax.lax.scan(step, (h0, c0), jnp.transpose(x, (1, 0, 2)))
    r_out = jnp.transpose(hs, (1, 0, 2))                    # (B, T, H)
    return r_out @ w_out.T + b_out                          # (B, T, OUT)


if __name__ == "__main__":
    key = jax.random.PRNGKey(0)
    pkey, xkey = jax.random.split(key)
    params = init_params(pkey)

    B, T = 2, 8
    x = jax.random.normal(xkey, (B, T, INPUT_SIZE), jnp.float32)

    out = jax.block_until_ready(lstm_forward(x, params))
    ref = jax.block_until_ready(lstm_forward_ref(x, params))

    assert out.shape == (B, T, OUT_SIZE), out.shape
    assert jnp.allclose(out, ref, atol=1e-5, rtol=1e-5), float(jnp.max(jnp.abs(out - ref)))
    print("KERNEL_OK")
</pallas_src>

<mosaic_0001>
module attributes {stable_mosaic.version = 11 : i64} {
  func.func @_lstm_kernel(%arg0: memref<8x2x32xf32, #tpu.memory_space<vmem>>, %arg1: memref<8x32xf32, #tpu.memory_space<vmem>>, %arg2: memref<9x4xf32, #tpu.memory_space<vmem>>, %arg3: memref<8x2x4xf32, #tpu.memory_space<vmem>>, %arg4: memref<16x8xf32, #tpu.memory_space<vmem>>) attributes {dimension_semantics = [], scalar_prefetch = 0 : i64, scratch_operands = 1 : i64, tpu.core_type = #tpu.core_type<tc>} {
    %c0 = arith.constant 0 : index
    %c0_0 = arith.constant 0 : index
    %c0_1 = arith.constant 0 : index
    %0 = vector.load %arg0[%c0, %c0_0, %c0_1] : memref<8x2x32xf32, #tpu.memory_space<vmem>>, vector<8x2x32xf32>
    %c0_2 = arith.constant 0 : index
    %c0_3 = arith.constant 0 : index
    %1 = vector.load %arg1[%c0_2, %c0_3] : memref<8x32xf32, #tpu.memory_space<vmem>>, vector<8x32xf32>
    %cst = arith.constant 0.000000e+00 : f32
    %2 = vector.broadcast %cst : f32 to vector<2x8xf32>
    %cst_4 = arith.constant 0.000000e+00 : f32
    %3 = vector.broadcast %cst_4 : f32 to vector<2x8xf32>
    %4 = vector.extract_strided_slice %0 {offsets = [0, 0, 0], sizes = [1, 2, 32], strides = [1, 1, 1]} : vector<8x2x32xf32> to vector<1x2x32xf32>
    %5 = vector.shape_cast %4 : vector<1x2x32xf32> to vector<2x32xf32>
    %cst_5 = arith.constant dense<0.000000e+00> : vector<2x32xf32>
    %6 = tpu.matmul %2, %1, %cst_5 {dimension_numbers = #tpu.dot_dimension_numbers<[1], [0], [0], [1], [0, 0, 1, 1], [], []>} : vector<2x8xf32>, vector<8x32xf32>, vector<2x32xf32> -> vector<2x32xf32>
    %7 = arith.addf %5, %6 : vector<2x32xf32>
    %8 = vector.extract_strided_slice %7 {offsets = [0, 0], sizes = [2, 24], strides = [1, 1]} : vector<2x32xf32> to vector<2x24xf32>
    %9 = arith.negf %8 : vector<2x24xf32>
    %10 = math.exp %9 : vector<2x24xf32>
    %cst_6 = arith.constant 1.000000e+00 : f32
    %11 = vector.broadcast %cst_6 : f32 to vector<2x24xf32>
    %12 = arith.addf %11, %10 : vector<2x24xf32>
    %13 = arith.divf %11, %12 : vector<2x24xf32>
    %14 = vector.extract_strided_slice %7 {offsets = [0, 24], sizes = [2, 8], strides = [1, 1]} : vector<2x32xf32> to vector<2x8xf32>
    %15 = math.tanh %14 : vector<2x8xf32>
    %16 = vector.extract_strided_slice %13 {offsets = [0, 0], sizes = [2, 8], strides = [1, 1]} : vector<2x24xf32> to vector<2x8xf32>
    %17 = vector.extract_strided_slice %13 {offsets = [0, 8], sizes = [2, 8], strides = [1, 1]} : vector<2x24xf32> to vector<2x8xf32>
    %18 = vector.extract_strided_slice %13 {offsets = [0, 16], sizes = [2, 8], strides = [1, 1]} : vector<2x24xf32> to vector<2x8xf32>
    %19 = arith.mulf %17, %3 : vector<2x8xf32>
    %20 = arith.mulf %16, %15 : vector<2x8xf32>
    %21 = arith.addf %19, %20 : vector<2x8xf32>
    %22 = math.tanh %21 : vector<2x8xf32>
    %23 = arith.mulf %18, %22 : vector<2x8xf32>
    %c0_7 = arith.constant 0 : index
    %c0_8 = arith.constant 0 : index
    %24 = vector.load %arg4[%c0_7, %c0_8] : memref<16x8xf32, #tpu.memory_space<vmem>>, vector<2x8xf32>
    tpu.vector_store %arg4[%c0_7, %c0_8], %23 {strides = array<i32>} : memref<16x8xf32, #tpu.memory_space<vmem>>, vector<2x8xf32>,
    %25 = vector.extract_strided_slice %0 {offsets = [1, 0, 0], sizes = [1, 2, 32], strides = [1, 1, 1]} : vector<8x2x32xf32> to vector<1x2x32xf32>
    %26 = vector.shape_cast %25 : vector<1x2x32xf32> to vector<2x32xf32>
    %cst_9 = arith.constant dense<0.000000e+00> : vector<2x32xf32>
    %27 = tpu.matmul %23, %1, %cst_9 {dimension_numbers = #tpu.dot_dimension_numbers<[1], [0], [0], [1], [0, 0, 1, 1], [], []>} : vector<2x8xf32>, vector<8x32xf32>, vector<2x32xf32> -> vector<2x32xf32>
    %28 = arith.addf %26, %27 : vector<2x32xf32>
    %29 = vector.extract_strided_slice %28 {offsets = [0, 0], sizes = [2, 24], strides = [1, 1]} : vector<2x32xf32> to vector<2x24xf32>
    %30 = arith.negf %29 : vector<2x24xf32>
    %31 = math.exp %30 : vector<2x24xf32>
    %cst_10 = arith.constant 1.000000e+00 : f32
    %32 = vector.broadcast %cst_10 : f32 to vector<2x24xf32>
    %33 = arith.addf %32, %31 : vector<2x24xf32>
    %34 = arith.divf %32, %33 : vector<2x24xf32>
    %35 = vector.extract_strided_slice %28 {offsets = [0, 24], sizes = [2, 8], strides = [1, 1]} : vector<2x32xf32> to vector<2x8xf32>
    %36 = math.tanh %35 : vector<2x8xf32>
    %37 = vector.extract_strided_slice %34 {offsets = [0, 0], sizes = [2, 8], strides = [1, 1]} : vector<2x24xf32> to vector<2x8xf32>
    %38 = vector.extract_strided_slice %34 {offsets = [0, 8], sizes = [2, 8], strides = [1, 1]} : vector<2x24xf32> to vector<2x8xf32>
    %39 = vector.extract_strided_slice %34 {offsets = [0, 16], sizes = [2, 8], strides = [1, 1]} : vector<2x24xf32> to vector<2x8xf32>
    %40 = arith.mulf %38, %21 : vector<2x8xf32>
    %41 = arith.mulf %37, %36 : vector<2x8xf32>
    %42 = arith.addf %40, %41 : vector<2x8xf32>
    %43 = math.tanh %42 : vector<2x8xf32>
    %44 = arith.mulf %39, %43 : vector<2x8xf32>
    %c2 = arith.constant 2 : index
    %c0_11 = arith.constant 0 : index
    %45 = vector.load %arg4[%c2, %c0_11] : memref<16x8xf32, #tpu.memory_space<vmem>>, vector<2x8xf32>
    tpu.vector_store %arg4[%c2, %c0_11], %44 {strides = array<i32>} : memref<16x8xf32, #tpu.memory_space<vmem>>, vector<2x8xf32>,
    %46 = vector.extract_strided_slice %0 {offsets = [2, 0, 0], sizes = [1, 2, 32], strides = [1, 1, 1]} : vector<8x2x32xf32> to vector<1x2x32xf32>
    %47 = vector.shape_cast %46 : vector<1x2x32xf32> to vector<2x32xf32>
    %cst_12 = arith.constant dense<0.000000e+00> : vector<2x32xf32>
    %48 = tpu.matmul %44, %1, %cst_12 {dimension_numbers = #tpu.dot_dimension_numbers<[1], [0], [0], [1], [0, 0, 1, 1], [], []>} : vector<2x8xf32>, vector<8x32xf32>, vector<2x32xf32> -> vector<2x32xf32>
    %49 = arith.addf %47, %48 : vector<2x32xf32>
    %50 = vector.extract_strided_slice %49 {offsets = [0, 0], sizes = [2, 24], strides = [1, 1]} : vector<2x32xf32> to vector<2x24xf32>
    %51 = arith.negf %50 : vector<2x24xf32>
    %52 = math.exp %51 : vector<2x24xf32>
    %cst_13 = arith.constant 1.000000e+00 : f32
    %53 = vector.broadcast %cst_13 : f32 to vector<2x24xf32>
    %54 = arith.addf %53, %52 : vector<2x24xf32>
    %55 = arith.divf %53, %54 : vector<2x24xf32>
    %56 = vector.extract_strided_slice %49 {offsets = [0, 24], sizes = [2, 8], strides = [1, 1]} : vector<2x32xf32> to vector<2x8xf32>
    %57 = math.tanh %56 : vector<2x8xf32>
    %58 = vector.extract_strided_slice %55 {offsets = [0, 0], sizes = [2, 8], strides = [1, 1]} : vector<2x24xf32> to vector<2x8xf32>
    %59 = vector.extract_strided_slice %55 {offsets = [0, 8], sizes = [2, 8], strides = [1, 1]} : vector<2x24xf32> to vector<2x8xf32>
    %60 = vector.extract_strided_slice %55 {offsets = [0, 16], sizes = [2, 8], strides = [1, 1]} : vector<2x24xf32> to vector<2x8xf32>
    %61 = arith.mulf %59, %42 : vector<2x8xf32>
    %62 = arith.mulf %58, %57 : vector<2x8xf32>
    %63 = arith.addf %61, %62 : vector<2x8xf32>
    %64 = math.tanh %63 : vector<2x8xf32>
    %65 = arith.mulf %60, %64 : vector<2x8xf32>
    %c4 = arith.constant 4 : index
    %c0_14 = arith.constant 0 : index
    %66 = vector.load %arg4[%c4, %c0_14] : memref<16x8xf32, #tpu.memory_space<vmem>>, vector<2x8xf32>
    tpu.vector_store %arg4[%c4, %c0_14], %65 {strides = array<i32>} : memref<16x8xf32, #tpu.memory_space<vmem>>, vector<2x8xf32>,
    %67 = vector.extract_strided_slice %0 {offsets = [3, 0, 0], sizes = [1, 2, 32], strides = [1, 1, 1]} : vector<8x2x32xf32> to vector<1x2x32xf32>
    %68 = vector.shape_cast %67 : vector<1x2x32xf32> to vector<2x32xf32>
    %cst_15 = arith.constant dense<0.000000e+00> : vector<2x32xf32>
    %69 = tpu.matmul %65, %1, %cst_15 {dimension_numbers = #tpu.dot_dimension_numbers<[1], [0], [0], [1], [0, 0, 1, 1], [], []>} : vector<2x8xf32>, vector<8x32xf32>, vector<2x32xf32> -> vector<2x32xf32>
    %70 = arith.addf %68, %69 : vector<2x32xf32>
    %71 = vector.extract_strided_slice %70 {offsets = [0, 0], sizes = [2, 24], strides = [1, 1]} : vector<2x32xf32> to vector<2x24xf32>
    %72 = arith.negf %71 : vector<2x24xf32>
    %73 = math.exp %72 : vector<2x24xf32>
    %cst_16 = arith.constant 1.000000e+00 : f32
    %74 = vector.broadcast %cst_16 : f32 to vector<2x24xf32>
    %75 = arith.addf %74, %73 : vector<2x24xf32>
    %76 = arith.divf %74, %75 : vector<2x24xf32>
    %77 = vector.extract_strided_slice %70 {offsets = [0, 24], sizes = [2, 8], strides = [1, 1]} : vector<2x32xf32> to vector<2x8xf32>
    %78 = math.tanh %77 : vector<2x8xf32>
    %79 = vector.extract_strided_slice %76 {offsets = [0, 0], sizes = [2, 8], strides = [1, 1]} : vector<2x24xf32> to vector<2x8xf32>
    %80 = vector.extract_strided_slice %76 {offsets = [0, 8], sizes = [2, 8], strides = [1, 1]} : vector<2x24xf32> to vector<2x8xf32>
    %81 = vector.extract_strided_slice %76 {offsets = [0, 16], sizes = [2, 8], strides = [1, 1]} : vector<2x24xf32> to vector<2x8xf32>
    %82 = arith.mulf %80, %63 : vector<2x8xf32>
    %83 = arith.mulf %79, %78 : vector<2x8xf32>
    %84 = arith.addf %82, %83 : vector<2x8xf32>
    %85 = math.tanh %84 : vector<2x8xf32>
    %86 = arith.mulf %81, %85 : vector<2x8xf32>
    %c6 = arith.constant 6 : index
    %c0_17 = arith.constant 0 : index
    %87 = vector.load %arg4[%c6, %c0_17] : memref<16x8xf32, #tpu.memory_space<vmem>>, vector<2x8xf32>
    tpu.vector_store %arg4[%c6, %c0_17], %86 {strides = array<i32>} : memref<16x8xf32, #tpu.memory_space<vmem>>, vector<2x8xf32>,
    %88 = vector.extract_strided_slice %0 {offsets = [4, 0, 0], sizes = [1, 2, 32], strides = [1, 1, 1]} : vector<8x2x32xf32> to vector<1x2x32xf32>
    %89 = vector.shape_cast %88 : vector<1x2x32xf32> to vector<2x32xf32>
    %cst_18 = arith.constant dense<0.000000e+00> : vector<2x32xf32>
    %90 = tpu.matmul %86, %1, %cst_18 {dimension_numbers = #tpu.dot_dimension_numbers<[1], [0], [0], [1], [0, 0, 1, 1], [], []>} : vector<2x8xf32>, vector<8x32xf32>, vector<2x32xf32> -> vector<2x32xf32>
    %91 = arith.addf %89, %90 : vector<2x32xf32>
    %92 = vector.extract_strided_slice %91 {offsets = [0, 0], sizes = [2, 24], strides = [1, 1]} : vector<2x32xf32> to vector<2x24xf32>
    %93 = arith.negf %92 : vector<2x24xf32>
    %94 = math.exp %93 : vector<2x24xf32>
    %cst_19 = arith.constant 1.000000e+00 : f32
    %95 = vector.broadcast %cst_19 : f32 to vector<2x24xf32>
    %96 = arith.addf %95, %94 : vector<2x24xf32>
    %97 = arith.divf %95, %96 : vector<2x24xf32>
    %98 = vector.extract_strided_slice %91 {offsets = [0, 24], sizes = [2, 8], strides = [1, 1]} : vector<2x32xf32> to vector<2x8xf32>
    %99 = math.tanh %98 : vector<2x8xf32>
    %100 = vector.extract_strided_slice %97 {offsets = [0, 0], sizes = [2, 8], strides = [1, 1]} : vector<2x24xf32> to vector<2x8xf32>
    %101 = vector.extract_strided_slice %97 {offsets = [0, 8], sizes = [2, 8], strides = [1, 1]} : vector<2x24xf32> to vector<2x8xf32>
    %102 = vector.extract_strided_slice %97 {offsets = [0, 16], sizes = [2, 8], strides = [1, 1]} : vector<2x24xf32> to vector<2x8xf32>
    %103 = arith.mulf %101, %84 : vector<2x8xf32>
    %104 = arith.mulf %100, %99 : vector<2x8xf32>
    %105 = arith.addf %103, %104 : vector<2x8xf32>
    %106 = math.tanh %105 : vector<2x8xf32>
    %107 = arith.mulf %102, %106 : vector<2x8xf32>
    %c8 = arith.constant 8 : index
    %c0_20 = arith.constant 0 : index
    %108 = vector.load %arg4[%c8, %c0_20] : memref<16x8xf32, #tpu.memory_space<vmem>>, vector<2x8xf32>
    tpu.vector_store %arg4[%c8, %c0_20], %107 {strides = array<i32>} : memref<16x8xf32, #tpu.memory_space<vmem>>, vector<2x8xf32>,
    %109 = vector.extract_strided_slice %0 {offsets = [5, 0, 0], sizes = [1, 2, 32], strides = [1, 1, 1]} : vector<8x2x32xf32> to vector<1x2x32xf32>
    %110 = vector.shape_cast %109 : vector<1x2x32xf32> to vector<2x32xf32>
    %cst_21 = arith.constant dense<0.000000e+00> : vector<2x32xf32>
    %111 = tpu.matmul %107, %1, %cst_21 {dimension_numbers = #tpu.dot_dimension_numbers<[1], [0], [0], [1], [0, 0, 1, 1], [], []>} : vector<2x8xf32>, vector<8x32xf32>, vector<2x32xf32> -> vector<2x32xf32>
    %112 = arith.addf %110, %111 : vector<2x32xf32>
    %113 = vector.extract_strided_slice %112 {offsets = [0, 0], sizes = [2, 24], strides = [1, 1]} : vector<2x32xf32> to vector<2x24xf32>
    %114 = arith.negf %113 : vector<2x24xf32>
    %115 = math.exp %114 : vector<2x24xf32>
    %cst_22 = arith.constant 1.000000e+00 : f32
    %116 = vector.broadcast %cst_22 : f32 to vector<2x24xf32>
    %117 = arith.addf %116, %115 : vector<2x24xf32>
    %118 = arith.divf %116, %117 : vector<2x24xf32>
    %119 = vector.extract_strided_slice %112 {offsets = [0, 24], sizes = [2, 8], strides = [1, 1]} : vector<2x32xf32> to vector<2x8xf32>
    %120 = math.tanh %119 : vector<2x8xf32>
    %121 = vector.extract_strided_slice %118 {offsets = [0, 0], sizes = [2, 8], strides = [1, 1]} : vector<2x24xf32> to vector<2x8xf32>
    %122 = vector.extract_strided_slice %118 {offsets = [0, 8], sizes = [2, 8], strides = [1, 1]} : vector<2x24xf32> to vector<2x8xf32>
    %123 = vector.extract_strided_slice %118 {offsets = [0, 16], sizes = [2, 8], strides = [1, 1]} : vector<2x24xf32> to vector<2x8xf32>
    %124 = arith.mulf %122, %105 : vector<2x8xf32>
    %125 = arith.mulf %121, %120 : vector<2x8xf32>
    %126 = arith.addf %124, %125 : vector<2x8xf32>
    %127 = math.tanh %126 : vector<2x8xf32>
    %128 = arith.mulf %123, %127 : vector<2x8xf32>
    %c10 = arith.constant 10 : index
    %c0_23 = arith.constant 0 : index
    %129 = vector.load %arg4[%c10, %c0_23] : memref<16x8xf32, #tpu.memory_space<vmem>>, vector<2x8xf32>
    tpu.vector_store %arg4[%c10, %c0_23], %128 {strides = array<i32>} : memref<16x8xf32, #tpu.memory_space<vmem>>, vector<2x8xf32>,
    %130 = vector.extract_strided_slice %0 {offsets = [6, 0, 0], sizes = [1, 2, 32], strides = [1, 1, 1]} : vector<8x2x32xf32> to vector<1x2x32xf32>
    %131 = vector.shape_cast %130 : vector<1x2x32xf32> to vector<2x32xf32>
    %cst_24 = arith.constant dense<0.000000e+00> : vector<2x32xf32>
    %132 = tpu.matmul %128, %1, %cst_24 {dimension_numbers = #tpu.dot_dimension_numbers<[1], [0], [0], [1], [0, 0, 1, 1], [], []>} : vector<2x8xf32>, vector<8x32xf32>, vector<2x32xf32> -> vector<2x32xf32>
    %133 = arith.addf %131, %132 : vector<2x32xf32>
    %134 = vector.extract_strided_slice %133 {offsets = [0, 0], sizes = [2, 24], strides = [1, 1]} : vector<2x32xf32> to vector<2x24xf32>
    %135 = arith.negf %134 : vector<2x24xf32>
    %136 = math.exp %135 : vector<2x24xf32>
    %cst_25 = arith.constant 1.000000e+00 : f32
    %137 = vector.broadcast %cst_25 : f32 to vector<2x24xf32>
    %138 = arith.addf %137, %136 : vector<2x24xf32>
    %139 = arith.divf %137, %138 : vector<2x24xf32>
    %140 = vector.extract_strided_slice %133 {offsets = [0, 24], sizes = [2, 8], strides = [1, 1]} : vector<2x32xf32> to vector<2x8xf32>
    %141 = math.tanh %140 : vector<2x8xf32>
    %142 = vector.extract_strided_slice %139 {offsets = [0, 0], sizes = [2, 8], strides = [1, 1]} : vector<2x24xf32> to vector<2x8xf32>
    %143 = vector.extract_strided_slice %139 {offsets = [0, 8], sizes = [2, 8], strides = [1, 1]} : vector<2x24xf32> to vector<2x8xf32>
    %144 = vector.extract_strided_slice %139 {offsets = [0, 16], sizes = [2, 8], strides = [1, 1]} : vector<2x24xf32> to vector<2x8xf32>
    %145 = arith.mulf %143, %126 : vector<2x8xf32>
    %146 = arith.mulf %142, %141 : vector<2x8xf32>
    %147 = arith.addf %145, %146 : vector<2x8xf32>
    %148 = math.tanh %147 : vector<2x8xf32>
    %149 = arith.mulf %144, %148 : vector<2x8xf32>
    %c12 = arith.constant 12 : index
    %c0_26 = arith.constant 0 : index
    %150 = vector.load %arg4[%c12, %c0_26] : memref<16x8xf32, #tpu.memory_space<vmem>>, vector<2x8xf32>
    tpu.vector_store %arg4[%c12, %c0_26], %149 {strides = array<i32>} : memref<16x8xf32, #tpu.memory_space<vmem>>, vector<2x8xf32>,
    %151 = vector.extract_strided_slice %0 {offsets = [7, 0, 0], sizes = [1, 2, 32], strides = [1, 1, 1]} : vector<8x2x32xf32> to vector<1x2x32xf32>
    %152 = vector.shape_cast %151 : vector<1x2x32xf32> to vector<2x32xf32>
    %cst_27 = arith.constant dense<0.000000e+00> : vector<2x32xf32>
    %153 = tpu.matmul %149, %1, %cst_27 {dimension_numbers = #tpu.dot_dimension_numbers<[1], [0], [0], [1], [0, 0, 1, 1], [], []>} : vector<2x8xf32>, vector<8x32xf32>, vector<2x32xf32> -> vector<2x32xf32>
    %154 = arith.addf %152, %153 : vector<2x32xf32>
    %155 = vector.extract_strided_slice %154 {offsets = [0, 0], sizes = [2, 24], strides = [1, 1]} : vector<2x32xf32> to vector<2x24xf32>
    %156 = arith.negf %155 : vector<2x24xf32>
    %157 = math.exp %156 : vector<2x24xf32>
    %cst_28 = arith.constant 1.000000e+00 : f32
    %158 = vector.broadcast %cst_28 : f32 to vector<2x24xf32>
    %159 = arith.addf %158, %157 : vector<2x24xf32>
    %160 = arith.divf %158, %159 : vector<2x24xf32>
    %161 = vector.extract_strided_slice %154 {offsets = [0, 24], sizes = [2, 8], strides = [1, 1]} : vector<2x32xf32> to vector<2x8xf32>
    %162 = math.tanh %161 : vector<2x8xf32>
    %163 = vector.extract_strided_slice %160 {offsets = [0, 0], sizes = [2, 8], strides = [1, 1]} : vector<2x24xf32> to vector<2x8xf32>
    %164 = vector.extract_strided_slice %160 {offsets = [0, 8], sizes = [2, 8], strides = [1, 1]} : vector<2x24xf32> to vector<2x8xf32>
    %165 = vector.extract_strided_slice %160 {offsets = [0, 16], sizes = [2, 8], strides = [1, 1]} : vector<2x24xf32> to vector<2x8xf32>
    %166 = arith.mulf %164, %147 : vector<2x8xf32>
    %167 = arith.mulf %163, %162 : vector<2x8xf32>
    %168 = arith.addf %166, %167 : vector<2x8xf32>
    %169 = math.tanh %168 : vector<2x8xf32>
    %170 = arith.mulf %165, %169 : vector<2x8xf32>
    %c14 = arith.constant 14 : index
    %c0_29 = arith.constant 0 : index
    %171 = vector.load %arg4[%c14, %c0_29] : memref<16x8xf32, #tpu.memory_space<vmem>>, vector<2x8xf32>
    tpu.vector_store %arg4[%c14, %c0_29], %170 {strides = array<i32>} : memref<16x8xf32, #tpu.memory_space<vmem>>, vector<2x8xf32>,
    %c0_30 = arith.constant 0 : index
    %c0_31 = arith.constant 0 : index
    %172 = vector.load %arg2[%c0_30, %c0_31] : memref<9x4xf32, #tpu.memory_space<vmem>>, vector<9x4xf32>
    %c0_32 = arith.constant 0 : index
    %c0_33 = arith.constant 0 : index
    %173 = vector.load %arg4[%c0_32, %c0_33] : memref<16x8xf32, #tpu.memory_space<vmem>>, vector<16x8xf32>
    %174 = vector.extract_strided_slice %172 {offsets = [0, 0], sizes = [8, 4], strides = [1, 1]} : vector<9x4xf32> to vector<8x4xf32>
    %cst_34 = arith.constant dense<0.000000e+00> : vector<16x4xf32>
    %175 = tpu.matmul %173, %174, %cst_34 {dimension_numbers = #tpu.dot_dimension_numbers<[1], [0], [0], [1], [0, 0, 1, 1], [], []>} : vector<16x8xf32>, vector<8x4xf32>, vector<16x4xf32> -> vector<16x4xf32>
    %176 = vector.extract_strided_slice %172 {offsets = [8, 0], sizes = [1, 4], strides = [1, 1]} : vector<9x4xf32> to vector<1x4xf32>
    %177 = vector.broadcast %176 : vector<1x4xf32> to vector<16x4xf32>
    %178 = arith.addf %175, %177 : vector<16x4xf32>
    %179 = vector.shape_cast %178 : vector<16x4xf32> to vector<8x2x4xf32>
    %c0_35 = arith.constant 0 : index
    %c0_36 = arith.constant 0 : index
    %c0_37 = arith.constant 0 : index
    %180 = vector.load %arg3[%c0_35, %c0_36, %c0_37] : memref<8x2x4xf32, #tpu.memory_space<vmem>>, vector<8x2x4xf32>
    tpu.vector_store %arg3[%c0_35, %c0_36, %c0_37], %179 {strides = array<i32>} : memref<8x2x4xf32, #tpu.memory_space<vmem>>, vector<8x2x4xf32>,
    return
  }
}

</mosaic_0001>

<llo_original>
// kernel: lstm_forward.1
$region0: #{lstm_forward.1}
  #allocation0 [shape = 'u32[]', space=smem, size = 0x4, offset = 0x4, fixed_abs, tag = 'smem constant byte address 0x4 - core index']
  #allocation1 [shape = 'u32[144,128]{1,0:T(1,128)}', space=vmem, size = 0x12000, scoped, tag = 'internal scratch']
  #allocation2 [shape = 'f32[16,8]{1,0:T(8,128)}', space=vmem, size = 0x2000, scoped, tag = 'scratch operand']
  %s0 = inlined_call_operand.vmem [shape: f32[8,2,32], index: 0, kind: input, shape index: {}]
  %s1 = inlined_call_operand.vmem [shape: f32[8,32], index: 1, kind: input, shape index: {}]
  %s2 = inlined_call_operand.vmem [shape: f32[9,4], index: 2, kind: input, shape index: {}]
  %s3 = inlined_call_operand.vmem [shape: f32[8,2,4], index: 3, kind: output, shape index: {}]
  %s4 = sld [smem:[#allocation0]]
  $region22: #{lstm_forward.1} parent=0
    _
  %s6 = ssub.s32 1, %s4
  %s7 = scalar_select 0, %s6, %s4
  // Predicated region
  $region2: #{lstm_forward.1} parent=0 // pred_check
    _
  $region3: #{lstm_forward.1} parent=0 // pred_check_branch
    %9 = sbr.rel (0) target = $region5
  $region4: #{lstm_forward.1} parent=0 // pred_region
    _
  $region5: #{lstm_forward.1} parent=0 // pred_fallthru
    _
  // Predicated region
  $region6: #{lstm_forward.1} parent=0 // pred_check
    _
  $region7: #{lstm_forward.1} parent=0 // pred_check_branch
    %11 = sbr.rel (0) target = $region9
  $region8: #{lstm_forward.1} parent=0 // pred_region
    _
  $region9: #{lstm_forward.1} parent=0 // pred_fallthru
    _
  // Predicated region
  $region10: #{lstm_forward.1} parent=0 // pred_check
    _
  $region11: #{lstm_forward.1} parent=0 // pred_check_branch
    %13 = sbr.rel (0) target = $region13
  $region12: #{lstm_forward.1} parent=0 // pred_region
    _
  $region13: #{lstm_forward.1} parent=0 // pred_fallthru
    _
  %v14 = vld [vmem:[%s0] sm:$0x3]
  %v15 = vld [vmem:[%s0 + $0x2] sm:$0x3]
  %v16 = vld [vmem:[%s0 + $0x4] sm:$0x3]
  %v17 = vld [vmem:[%s0 + $0x6] sm:$0x3]
  %v18 = vld [vmem:[%s0 + $0x8] sm:$0x3]
  %v19 = vld [vmem:[%s0 + $0xa] sm:$0x3]
  %v20 = vld [vmem:[%s0 + $0xc] sm:$0x3]
  %v21 = vld [vmem:[%s0 + $0xe] sm:$0x3]
  %v22 = vld [vmem:[%s1] sm:$0xff]
  %vm23 = vcmask 64512
  %v25 = vsel %vm23, 0.0, 0
  %27 = vmatprep.subr.mxu0 0.0
  %28 = vmatpush1.msra.mxu0 %v22
  %29 = vmatprep.subr.mxu0 0.0
  %30 = vmatpush1.msra.mxu0 0.0
  %31 = vmatprep.subr.mxu0 0.0
  %32 = vmatpush1.msra.mxu0 0.0
  %33 = vmatprep.subr.mxu0 0.0
  %34 = vmatpush1.msra.mxu0 0.0
  %35 = vmatprep.subr.mxu0 0.0
  %36 = vmatpush1.msra.mxu0 0.0
  %37 = vmatprep.subr.mxu0 0.0
  %38 = vmatpush1.msra.mxu0 0.0
  %39 = vmatprep.subr.mxu0 0.0
  %40 = vmatpush1.msra.mxu0 0.0
  %41 = vmatprep.subr.mxu0 0.0
  %42 = vmatpush1.msra.mxu0 0.0
  %43 = vmatprep.subr.mxu0 0.0
  %44 = vmatpush1.msra.mxu0 0.0
  %45 = vmatprep.subr.mxu0 0.0
  %46 = vmatpush1.msra.mxu0 0.0
  %47 = vmatprep.subr.mxu0 0.0
  %48 = vmatpush1.msra.mxu0 0.0
  %49 = vmatprep.subr.mxu0 0.0
  %50 = vmatpush1.msra.mxu0 0.0
  %51 = vmatprep.subr.mxu0 0.0
  %52 = vmatpush1.msra.mxu0 0.0
  %53 = vmatprep.subr.mxu0 0.0
  %54 = vmatpush1.msra.mxu0 0.0
  %55 = vmatprep.subr.mxu0 0.0
  %56 = vmatpush1.msra.mxu0 0.0
  %57 = vmatprep.subr.mxu0 0.0
  %58 = vmatpush1.msra.mxu0 0.0
  %59 = vmatprep.subr.mxu0 0.0
  %60 = vmatpush1.msra.mxu0 0.0
  %61 = vmatprep.subr.mxu0 0.0
  %62 = vmatpush1.msra.mxu0 0.0
  %63 = vmatprep.subr.mxu0 0.0
  %64 = vmatpush1.msra.mxu0 0.0
  %65 = vmatprep.subr.mxu0 0.0
  %66 = vmatpush1.msra.mxu0 0.0
  %67 = vmatprep.subr.mxu0 0.0
  %68 = vmatpush1.msra.mxu0 0.0
  %69 = vmatprep.subr.mxu0 0.0
  %70 = vmatpush1.msra.mxu0 0.0
  %71 = vmatprep.subr.mxu0 0.0
  %72 = vmatpush1.msra.mxu0 0.0
  %73 = vmatprep.subr.mxu0 0.0
  %74 = vmatpush1.msra.mxu0 0.0
  %75 = vmatprep.subr.mxu0 0.0
  %76 = vmatpush1.msra.mxu0 0.0
  %77 = vmatprep.subr.mxu0 0.0
  %78 = vmatpush1.msra.mxu0 0.0
  %79 = vmatprep.subr.mxu0 0.0
  %80 = vmatpush1.msra.mxu0 0.0
  %81 = vmatprep.subr.mxu0 0.0
  %82 = vmatpush1.msra.mxu0 0.0
  %83 = vmatprep.subr.mxu0 0.0
  %84 = vmatpush1.msra.mxu0 0.0
  %85 = vmatprep.subr.mxu0 0.0
  %86 = vmatpush1.msra.mxu0 0.0
  %87 = vmatprep.subr.mxu0 0.0
  %88 = vmatpush1.msra.mxu0 0.0
  %89 = vmatprep.subr.mxu0 0.0
  %90 = vmatpush1.msra.mxu0 0.0
  %91 = vmatprep.mubr.f32.mxu0 0.0
  %92 = vmatmul.mubr.f32.gmra.mrb[0].mxu0 %v25
  %v93 = vpop.f32.mrb[0].mxu0
  %v94 = vadd.f32 0.0, %v93
  %v95 = vpop.f32.mrb[0].mxu0
  %96 = vdwg.mxu0
  %v97 = vadd.f32 %v14, %v94
  %v98 = vxor.u32 %v97, 2147483648
  %v99 = vmul.f32 %v98, 1.442695
  %v100 = vpow.pop %v99
  %v101 = vadd.f32 %v100, 1.0
  %v102 = vrcp.pop %v101
  %v103 = vmul.f32 1.0, %v102
  %v104 = vtanh.pop %v97
  %v105 = vmul.f32 %v103, 0.0
  %107 = vrot.lane.b32.xlu0 %v104, 104
  %v108 = vpop.permute.xlu0 %107
  %v110 = vmul.f32 %v103, %v108
  %112 = vrot.lane.b32.xlu0 %v110, 8
  %v113 = vpop.permute.xlu0 %112
  %v115 = vadd.f32 %v105, %v113
  %v116 = vtanh.pop %v115
  %118 = vrot.lane.b32.xlu0 %v116, 8
  %v119 = vpop.permute.xlu0 %118
  %v121 = vmul.f32 %v103, %v119
  %123 = vrot.lane.b32.xlu0 %v121, 112
  %v124 = vpop.permute.xlu0 %123
  %vm126 = vcmask 58368
  %127 = vst.msk [vmem:[#allocation2] sm:$0x3] %vm126, %v124
  %v128 = vsel %vm23, %v124, 0
  %130 = vmatprep.subr.mxu0 0.0
  %131 = vmatpush1.msra.mxu0 %v22
  %132 = vmatprep.subr.mxu0 0.0
  %133 = vmatpush1.msra.mxu0 0.0
  %134 = vmatprep.subr.mxu0 0.0
  %135 = vmatpush1.msra.mxu0 0.0
  %136 = vmatprep.subr.mxu0 0.0
  %137 = vmatpush1.msra.mxu0 0.0
  %138 = vmatprep.subr.mxu0 0.0
  %139 = vmatpush1.msra.mxu0 0.0
  %140 = vmatprep.subr.mxu0 0.0
  %141 = vmatpush1.msra.mxu0 0.0
  %142 = vmatprep.subr.mxu0 0.0
  %143 = vmatpush1.msra.mxu0 0.0
  %144 = vmatprep.subr.mxu0 0.0
  %145 = vmatpush1.msra.mxu0 0.0
  %146 = vmatprep.subr.mxu0 0.0
  %147 = vmatpush1.msra.mxu0 0.0
  %148 = vmatprep.subr.mxu0 0.0
  %149 = vmatpush1.msra.mxu0 0.0
  %150 = vmatprep.subr.mxu0 0.0
  %151 = vmatpush1.msra.mxu0 0.0
  %152 = vmatprep.subr.mxu0 0.0
  %153 = vmatpush1.msra.mxu0 0.0
  %154 = vmatprep.subr.mxu0 0.0
  %155 = vmatpush1.msra.mxu0 0.0
  %156 = vmatprep.subr.mxu0 0.0
  %157 = vmatpush1.msra.mxu0 0.0
  %158 = vmatprep.subr.mxu0 0.0
  %159 = vmatpush1.msra.mxu0 0.0
  %160 = vmatprep.subr.mxu0 0.0
  %161 = vmatpush1.msra.mxu0 0.0
  %162 = vmatprep.subr.mxu0 0.0
  %163 = vmatpush1.msra.mxu0 0.0
  %164 = vmatprep.subr.mxu0 0.0
  %165 = vmatpush1.msra.mxu0 0.0
  %166 = vmatprep.subr.mxu0 0.0
  %167 = vmatpush1.msra.mxu0 0.0
  %168 = vmatprep.subr.mxu0 0.0
  %169 = vmatpush1.msra.mxu0 0.0
  %170 = vmatprep.subr.mxu0 0.0
  %171 = vmatpush1.msra.mxu0 0.0
  %172 = vmatprep.subr.mxu0 0.0
  %173 = vmatpush1.msra.mxu0 0.0
  %174 = vmatprep.subr.mxu0 0.0
  %175 = vmatpush1.msra.mxu0 0.0
  %176 = vmatprep.subr.mxu0 0.0
  %177 = vmatpush1.msra.mxu0 0.0
  %178 = vmatprep.subr.mxu0 0.0
  %179 = vmatpush1.msra.mxu0 0.0
  %180 = vmatprep.subr.mxu0 0.0
  %181 = vmatpush1.msra.mxu0 0.0
  %182 = vmatprep.subr.mxu0 0.0
  %183 = vmatpush1.msra.mxu0 0.0
  %184 = vmatprep.subr.mxu0 0.0
  %185 = vmatpush1.msra.mxu0 0.0
  %186 = vmatprep.subr.mxu0 0.0
  %187 = vmatpush1.msra.mxu0 0.0
  %188 = vmatprep.subr.mxu0 0.0
  %189 = vmatpush1.msra.mxu0 0.0
  %190 = vmatprep.subr.mxu0 0.0
  %191 = vmatpush1.msra.mxu0 0.0
  %192 = vmatprep.subr.mxu0 0.0
  %193 = vmatpush1.msra.mxu0 0.0
  %194 = vmatprep.mubr.f32.mxu0 0.0
  %195 = vmatmul.mubr.f32.gmra.mrb[0].mxu0 %v128
  %v196 = vpop.f32.mrb[0].mxu0
  %v197 = vadd.f32 0.0, %v196
  %v198 = vpop.f32.mrb[0].mxu0
  %199 = vdwg.mxu0
  %v200 = vadd.f32 %v15, %v197
  %v201 = vxor.u32 %v200, 2147483648
  %v202 = vmul.f32 %v201, 1.442695
  %v203 = vpow.pop %v202
  %v204 = vadd.f32 %v203, 1.0
  %v205 = vrcp.pop %v204
  %v206 = vmul.f32 1.0, %v205
  %v207 = vtanh.pop %v200
  %v208 = vmul.f32 %v206, %v115
  %210 = vrot.lane.b32.xlu0 %v207, 104
  %v211 = vpop.permute.xlu0 %210
  %v213 = vmul.f32 %v206, %v211
  %215 = vrot.lane.b32.xlu0 %v213, 8
  %v216 = vpop.permute.xlu0 %215
  %v218 = vadd.f32 %v208, %v216
  %v219 = vtanh.pop %v218
  %221 = vrot.lane.b32.xlu0 %v219, 8
  %v222 = vpop.permute.xlu0 %221
  %v224 = vmul.f32 %v206, %v222
  %226 = vrot.lane.b32.xlu0 %v224, 112
  %v227 = vpop.permute.xlu0 %226
  %229 = vst.msk [vmem:[#allocation2 + $0x2] sm:$0x3] %vm126, %v227
  %v230 = vsel %vm23, %v227, 0
  %232 = vmatprep.subr.mxu0 0.0
  %233 = vmatpush1.msra.mxu0 %v22
  %234 = vmatprep.subr.mxu0 0.0
  %235 = vmatpush1.msra.mxu0 0.0
  %236 = vmatprep.subr.mxu0 0.0
  %237 = vmatpush1.msra.mxu0 0.0
  %238 = vmatprep.subr.mxu0 0.0
  %239 = vmatpush1.msra.mxu0 0.0
  %240 = vmatprep.subr.mxu0 0.0
  %241 = vmatpush1.msra.mxu0 0.0
  %242 = vmatprep.subr.mxu0 0.0
  %243 = vmatpush1.msra.mxu0 0.0
  %244 = vmatprep.subr.mxu0 0.0
  %245 = vmatpush1.msra.mxu0 0.0
  %246 = vmatprep.subr.mxu0 0.0
  %247 = vmatpush1.msra.mxu0 0.0
  %248 = vmatprep.subr.mxu0 0.0
  %249 = vmatpush1.msra.mxu0 0.0
  %250 = vmatprep.subr.mxu0 0.0
  %251 = vmatpush1.msra.mxu0 0.0
  %252 = vmatprep.subr.mxu0 0.0
  %253 = vmatpush1.msra.mxu0 0.0
  %254 = vmatprep.subr.mxu0 0.0
  %255 = vmatpush1.msra.mxu0 0.0
  %256 = vmatprep.subr.mxu0 0.0
  %257 = vmatpush1.msra.mxu0 0.0
  %258 = vmatprep.subr.mxu0 0.0
  %259 = vmatpush1.msra.mxu0 0.0
  %260 = vmatprep.subr.mxu0 0.0
  %261 = vmatpush1.msra.mxu0 0.0
  %262 = vmatprep.subr.mxu0 0.0
  %263 = vmatpush1.msra.mxu0 0.0
  %264 = vmatprep.subr.mxu0 0.0
  %265 = vmatpush1.msra.mxu0 0.0
  %266 = vmatprep.subr.mxu0 0.0
  %267 = vmatpush1.msra.mxu0 0.0
  %268 = vmatprep.subr.mxu0 0.0
  %269 = vmatpush1.msra.mxu0 0.0
  %270 = vmatprep.subr.mxu0 0.0
  %271 = vmatpush1.msra.mxu0 0.0
  %272 = vmatprep.subr.mxu0 0.0
  %273 = vmatpush1.msra.mxu0 0.0
  %274 = vmatprep.subr.mxu0 0.0
  %275 = vmatpush1.msra.mxu0 0.0
  %276 = vmatprep.subr.mxu0 0.0
  %277 = vmatpush1.msra.mxu0 0.0
  %278 = vmatprep.subr.mxu0 0.0
  %279 = vmatpush1.msra.mxu0 0.0
  %280 = vmatprep.subr.mxu0 0.0
  %281 = vmatpush1.msra.mxu0 0.0
  %282 = vmatprep.subr.mxu0 0.0
  %283 = vmatpush1.msra.mxu0 0.0
  %284 = vmatprep.subr.mxu0 0.0
  %285 = vmatpush1.msra.mxu0 0.0
  %286 = vmatprep.subr.mxu0 0.0
  %287 = vmatpush1.msra.mxu0 0.0
  %288 = vmatprep.subr.mxu0 0.0
  %289 = vmatpush1.msra.mxu0 0.0
  %290 = vmatprep.subr.mxu0 0.0
  %291 = vmatpush1.msra.mxu0 0.0
  %292 = vmatprep.subr.mxu0 0.0
  %293 = vmatpush1.msra.mxu0 0.0
  %294 = vmatprep.subr.mxu0 0.0
  %295 = vmatpush1.msra.mxu0 0.0
  %296 = vmatprep.mubr.f32.mxu0 0.0
  %297 = vmatmul.mubr.f32.gmra.mrb[0].mxu0 %v230
  %v298 = vpop.f32.mrb[0].mxu0
  %v299 = vadd.f32 0.0, %v298
  %v300 = vpop.f32.mrb[0].mxu0
  %301 = vdwg.mxu0
  %v302 = vadd.f32 %v16, %v299
  %v303 = vxor.u32 %v302, 2147483648
  %v304 = vmul.f32 %v303, 1.442695
  %v305 = vpow.pop %v304
  %v306 = vadd.f32 %v305, 1.0
  %v307 = vrcp.pop %v306
  %v308 = vmul.f32 1.0, %v307
  %v309 = vtanh.pop %v302
  %v310 = vmul.f32 %v308, %v218
  %312 = vrot.lane.b32.xlu0 %v309, 104
  %v313 = vpop.permute.xlu0 %312
  %v315 = vmul.f32 %v308, %v313
  %317 = vrot.lane.b32.xlu0 %v315, 8
  %v318 = vpop.permute.xlu0 %317
  %v320 = vadd.f32 %v310, %v318
  %v321 = vtanh.pop %v320
  %323 = vrot.lane.b32.xlu0 %v321, 8
  %v324 = vpop.permute.xlu0 %323
  %v326 = vmul.f32 %v308, %v324
  %328 = vrot.lane.b32.xlu0 %v326, 112
  %v329 = vpop.permute.xlu0 %328
  %331 = vst.msk [vmem:[#allocation2 + $0x4] sm:$0x3] %vm126, %v329
  %v332 = vsel %vm23, %v329, 0
  %334 = vmatprep.subr.mxu0 0.0
  %335 = vmatpush1.msra.mxu0 %v22
  %336 = vmatprep.subr.mxu0 0.0
  %337 = vmatpush1.msra.mxu0 0.0
  %338 = vmatprep.subr.mxu0 0.0
  %339 = vmatpush1.msra.mxu0 0.0
  %340 = vmatprep.subr.mxu0 0.0
  %341 = vmatpush1.msra.mxu0 0.0
  %342 = vmatprep.subr.mxu0 0.0
  %343 = vmatpush1.msra.mxu0 0.0
  %344 = vmatprep.subr.mxu0 0.0
  %345 = vmatpush1.msra.mxu0 0.0
  %346 = vmatprep.subr.mxu0 0.0
  %347 = vmatpush1.msra.mxu0 0.0
  %348 = vmatprep.subr.mxu0 0.0
  %349 = vmatpush1.msra.mxu0 0.0
  %350 = vmatprep.subr.mxu0 0.0
  %351 = vmatpush1.msra.mxu0 0.0
  %352 = vmatprep.subr.mxu0 0.0
  %353 = vmatpush1.msra.mxu0 0.0
  %354 = vmatprep.subr.mxu0 0.0
  %355 = vmatpush1.msra.mxu0 0.0
  %356 = vmatprep.subr.mxu0 0.0
  %357 = vmatpush1.msra.mxu0 0.0
  %358 = vmatprep.subr.mxu0 0.0
  %359 = vmatpush1.msra.mxu0 0.0
  %360 = vmatprep.subr.mxu0 0.0
  %361 = vmatpush1.msra.mxu0 0.0
  %362 = vmatprep.subr.mxu0 0.0
  %363 = vmatpush1.msra.mxu0 0.0
  %364 = vmatprep.subr.mxu0 0.0
  %365 = vmatpush1.msra.mxu0 0.0
  %366 = vmatprep.subr.mxu0 0.0
  %367 = vmatpush1.msra.mxu0 0.0
  %368 = vmatprep.subr.mxu0 0.0
  %369 = vmatpush1.msra.mxu0 0.0
  %370 = vmatprep.subr.mxu0 0.0
  %371 = vmatpush1.msra.mxu0 0.0
  %372 = vmatprep.subr.mxu0 0.0
  %373 = vmatpush1.msra.mxu0 0.0
  %374 = vmatprep.subr.mxu0 0.0
  %375 = vmatpush1.msra.mxu0 0.0
  %376 = vmatprep.subr.mxu0 0.0
  %377 = vmatpush1.msra.mxu0 0.0
  %378 = vmatprep.subr.mxu0 0.0
  %379 = vmatpush1.msra.mxu0 0.0
  %380 = vmatprep.subr.mxu0 0.0
  %381 = vmatpush1.msra.mxu0 0.0
  %382 = vmatprep.subr.mxu0 0.0
  %383 = vmatpush1.msra.mxu0 0.0
  %384 = vmatprep.subr.mxu0 0.0
  %385 = vmatpush1.msra.mxu0 0.0
  %386 = vmatprep.subr.mxu0 0.0
  %387 = vmatpush1.msra.mxu0 0.0
  %388 = vmatprep.subr.mxu0 0.0
  %389 = vmatpush1.msra.mxu0 0.0
  %390 = vmatprep.subr.mxu0 0.0
  %391 = vmatpush1.msra.mxu0 0.0
  %392 = vmatprep.subr.mxu0 0.0
  %393 = vmatpush1.msra.mxu0 0.0
  %394 = vmatprep.subr.mxu0 0.0
  %395 = vmatpush1.msra.mxu0 0.0
  %396 = vmatprep.subr.mxu0 0.0
  %397 = vmatpush1.msra.mxu0 0.0
  %398 = vmatprep.mubr.f32.mxu0 0.0
  %399 = vmatmul.mubr.f32.gmra.mrb[0].mxu0 %v332
  %v400 = vpop.f32.mrb[0].mxu0
  %v401 = vadd.f32 0.0, %v400
  %v402 = vpop.f32.mrb[0].mxu0
  %403 = vdwg.mxu0
  %v404 = vadd.f32 %v17, %v401
  %v405 = vxor.u32 %v404, 2147483648
  %v406 = vmul.f32 %v405, 1.442695
  %v407 = vpow.pop %v406
  %v408 = vadd.f32 %v407, 1.0
  %v409 = vrcp.pop %v408
  %v410 = vmul.f32 1.0, %v409
  %v411 = vtanh.pop %v404
  %v412 = vmul.f32 %v410, %v320
  %414 = vrot.lane.b32.xlu0 %v411, 104
  %v415 = vpop.permute.xlu0 %414
  %v417 = vmul.f32 %v410, %v415
  %419 = vrot.lane.b32.xlu0 %v417, 8
  %v420 = vpop.permute.xlu0 %419
  %v422 = vadd.f32 %v412, %v420
  %v423 = vtanh.pop %v422
  %425 = vrot.lane.b32.xlu0 %v423, 8
  %v426 = vpop.permute.xlu0 %425
  %v428 = vmul.f32 %v410, %v426
  %430 = vrot.lane.b32.xlu0 %v428, 112
  %v431 = vpop.permute.xlu0 %430
  %433 = vst.msk [vmem:[#allocation2 + $0x6] sm:$0x3] %vm126, %v431
  %v434 = vsel %vm23, %v431, 0
  %436 = vmatprep.subr.mxu0 0.0
  %437 = vmatpush1.msra.mxu0 %v22
  %438 = vmatprep.subr.mxu0 0.0
  %439 = vmatpush1.msra.mxu0 0.0
  %440 = vmatprep.subr.mxu0 0.0
  %441 = vmatpush1.msra.mxu0 0.0
  %442 = vmatprep.subr.mxu0 0.0
  %443 = vmatpush1.msra.mxu0 0.0
  %444 = vmatprep.subr.mxu0 0.0
  %445 = vmatpush1.msra.mxu0 0.0
  %446 = vmatprep.subr.mxu0 0.0
  %447 = vmatpush1.msra.mxu0 0.0
  %448 = vmatprep.subr.mxu0 0.0
  %449 = vmatpush1.msra.mxu0 0.0
  %450 = vmatprep.subr.mxu0 0.0
  %451 = vmatpush1.msra.mxu0 0.0
  %452 = vmatprep.subr.mxu0 0.0
  %453 = vmatpush1.msra.mxu0 0.0
  %454 = vmatprep.subr.mxu0 0.0
  %455 = vmatpush1.msra.mxu0 0.0
  %456 = vmatprep.subr.mxu0 0.0
  %457 = vmatpush1.msra.mxu0 0.0
  %458 = vmatprep.subr.mxu0 0.0
  %459 = vmatpush1.msra.mxu0 0.0
  %460 = vmatprep.subr.mxu0 0.0
  %461 = vmatpush1.msra.mxu0 0.0
  %462 = vmatprep.subr.mxu0 0.0
  %463 = vmatpush1.msra.mxu0 0.0
  %464 = vmatprep.subr.mxu0 0.0
  %465 = vmatpush1.msra.mxu0 0.0
  %466 = vmatprep.subr.mxu0 0.0
  %467 = vmatpush1.msra.mxu0 0.0
  %468 = vmatprep.subr.mxu0 0.0
  %469 = vmatpush1.msra.mxu0 0.0
  %470 = vmatprep.subr.mxu0 0.0
  %471 = vmatpush1.msra.mxu0 0.0
  %472 = vmatprep.subr.mxu0 0.0
  %473 = vmatpush1.msra.mxu0 0.0
  %474 = vmatprep.subr.mxu0 0.0
  %475 = vmatpush1.msra.mxu0 0.0
  %476 = vmatprep.subr.mxu0 0.0
  %477 = vmatpush1.msra.mxu0 0.0
  %478 = vmatprep.subr.mxu0 0.0
  %479 = vmatpush1.msra.mxu0 0.0
  %480 = vmatprep.subr.mxu0 0.0
  %481 = vmatpush1.msra.mxu0 0.0
  %482 = vmatprep.subr.mxu0 0.0
  %483 = vmatpush1.msra.mxu0 0.0
  %484 = vmatprep.subr.mxu0 0.0
  %485 = vmatpush1.msra.mxu0 0.0
  %486 = vmatprep.subr.mxu0 0.0
  %487 = vmatpush1.msra.mxu0 0.0
  %488 = vmatprep.subr.mxu0 0.0
  %489 = vmatpush1.msra.mxu0 0.0
  %490 = vmatprep.subr.mxu0 0.0
  %491 = vmatpush1.msra.mxu0 0.0
  %492 = vmatprep.subr.mxu0 0.0
  %493 = vmatpush1.msra.mxu0 0.0
  %494 = vmatprep.subr.mxu0 0.0
  %495 = vmatpush1.msra.mxu0 0.0
  %496 = vmatprep.subr.mxu0 0.0
  %497 = vmatpush1.msra.mxu0 0.0
  %498 = vmatprep.subr.mxu0 0.0
  %499 = vmatpush1.msra.mxu0 0.0
  %500 = vmatprep.mubr.f32.mxu0 0.0
  %501 = vmatmul.mubr.f32.gmra.mrb[0].mxu0 %v434
  %v502 = vpop.f32.mrb[0].mxu0
  %v503 = vadd.f32 0.0, %v502
  %v504 = vpop.f32.mrb[0].mxu0
  %505 = vdwg.mxu0
  %v506 = vadd.f32 %v18, %v503
  %v507 = vxor.u32 %v506, 2147483648
  %v508 = vmul.f32 %v507, 1.442695
  %v509 = vpow.pop %v508
  %v510 = vadd.f32 %v509, 1.0
  %v511 = vrcp.pop %v510
  %v512 = vmul.f32 1.0, %v511
  %v513 = vtanh.pop %v506
  %v514 = vmul.f32 %v512, %v422
  %516 = vrot.lane.b32.xlu0 %v513, 104
  %v517 = vpop.permute.xlu0 %516
  %v519 = vmul.f32 %v512, %v517
  %521 = vrot.lane.b32.xlu0 %v519, 8
  %v522 = vpop.permute.xlu0 %521
  %v524 = vadd.f32 %v514, %v522
  %v525 = vtanh.pop %v524
  %527 = vrot.lane.b32.xlu0 %v525, 8
  %v528 = vpop.permute.xlu0 %527
  %v530 = vmul.f32 %v512, %v528
  %532 = vrot.lane.b32.xlu0 %v530, 112
  %v533 = vpop.permute.xlu0 %532
  %535 = vst.msk [vmem:[#allocation2 + $0x8] sm:$0x3] %vm126, %v533
  %v536 = vsel %vm23, %v533, 0
  %538 = vmatprep.subr.mxu0 0.0
  %539 = vmatpush1.msra.mxu0 %v22
  %540 = vmatprep.subr.mxu0 0.0
  %541 = vmatpush1.msra.mxu0 0.0
  %542 = vmatprep.subr.mxu0 0.0
  %543 = vmatpush1.msra.mxu0 0.0
  %544 = vmatprep.subr.mxu0 0.0
  %545 = vmatpush1.msra.mxu0 0.0
  %546 = vmatprep.subr.mxu0 0.0
  %547 = vmatpush1.msra.mxu0 0.0
  %548 = vmatprep.subr.mxu0 0.0
  %549 = vmatpush1.msra.mxu0 0.0
  %550 = vmatprep.subr.mxu0 0.0
  %551 = vmatpush1.msra.mxu0 0.0
  %552 = vmatprep.subr.mxu0 0.0
  %553 = vmatpush1.msra.mxu0 0.0
  %554 = vmatprep.subr.mxu0 0.0
  %555 = vmatpush1.msra.mxu0 0.0
  %556 = vmatprep.subr.mxu0 0.0
  %557 = vmatpush1.msra.mxu0 0.0
  %558 = vmatprep.subr.mxu0 0.0
  %559 = vmatpush1.msra.mxu0 0.0
  %560 = vmatprep.subr.mxu0 0.0
  %561 = vmatpush1.msra.mxu0 0.0
  %562 = vmatprep.subr.mxu0 0.0
  %563 = vmatpush1.msra.mxu0 0.0
  %564 = vmatprep.subr.mxu0 0.0
  %565 = vmatpush1.msra.mxu0 0.0
  %566 = vmatprep.subr.mxu0 0.0
  %567 = vmatpush1.msra.mxu0 0.0
  %568 = vmatprep.subr.mxu0 0.0
  %569 = vmatpush1.msra.mxu0 0.0
  %570 = vmatprep.subr.mxu0 0.0
  %571 = vmatpush1.msra.mxu0 0.0
  %572 = vmatprep.subr.mxu0 0.0
  %573 = vmatpush1.msra.mxu0 0.0
  %574 = vmatprep.subr.mxu0 0.0
  %575 = vmatpush1.msra.mxu0 0.0
  %576 = vmatprep.subr.mxu0 0.0
  %577 = vmatpush1.msra.mxu0 0.0
  %578 = vmatprep.subr.mxu0 0.0
  %579 = vmatpush1.msra.mxu0 0.0
  %580 = vmatprep.subr.mxu0 0.0
  %581 = vmatpush1.msra.mxu0 0.0
  %582 = vmatprep.subr.mxu0 0.0
  %583 = vmatpush1.msra.mxu0 0.0
  %584 = vmatprep.subr.mxu0 0.0
  %585 = vmatpush1.msra.mxu0 0.0
  %586 = vmatprep.subr.mxu0 0.0
  %587 = vmatpush1.msra.mxu0 0.0
  %588 = vmatprep.subr.mxu0 0.0
  %589 = vmatpush1.msra.mxu0 0.0
  %590 = vmatprep.subr.mxu0 0.0
  %591 = vmatpush1.msra.mxu0 0.0
  %592 = vmatprep.subr.mxu0 0.0
  %593 = vmatpush1.msra.mxu0 0.0
  %594 = vmatprep.subr.mxu0 0.0
  %595 = vmatpush1.msra.mxu0 0.0
  %596 = vmatprep.subr.mxu0 0.0
  %597 = vmatpush1.msra.mxu0 0.0
  %598 = vmatprep.subr.mxu0 0.0
  %599 = vmatpush1.msra.mxu0 0.0
  %600 = vmatprep.subr.mxu0 0.0
  %601 = vmatpush1.msra.mxu0 0.0
  %602 = vmatprep.mubr.f32.mxu0 0.0
  %603 = vmatmul.mubr.f32.gmra.mrb[0].mxu0 %v536
  %v604 = vpop.f32.mrb[0].mxu0
  %v605 = vadd.f32 0.0, %v604
  %v606 = vpop.f32.mrb[0].mxu0
  %607 = vdwg.mxu0
  %v608 = vadd.f32 %v19, %v605
  %v609 = vxor.u32 %v608, 2147483648
  %v610 = vmul.f32 %v609, 1.442695
  %v611 = vpow.pop %v610
  %v612 = vadd.f32 %v611, 1.0
  %v613 = vrcp.pop %v612
  %v614 = vmul.f32 1.0, %v613
  %v615 = vtanh.pop %v608
  %v616 = vmul.f32 %v614, %v524
  %618 = vrot.lane.b32.xlu0 %v615, 104
  %v619 = vpop.permute.xlu0 %618
  %v621 = vmul.f32 %v614, %v619
  %623 = vrot.lane.b32.xlu0 %v621, 8
  %v624 = vpop.permute.xlu0 %623
  %v626 = vadd.f32 %v616, %v624
  %v627 = vtanh.pop %v626
  %629 = vrot.lane.b32.xlu0 %v627, 8
  %v630 = vpop.permute.xlu0 %629
  %v632 = vmul.f32 %v614, %v630
  %634 = vrot.lane.b32.xlu0 %v632, 112
  %v635 = vpop.permute.xlu0 %634
  %637 = vst.msk [vmem:[#allocation2 + $0xa] sm:$0x3] %vm126, %v635
  %v638 = vsel %vm23, %v635, 0
  %640 = vmatprep.subr.mxu0 0.0
  %641 = vmatpush1.msra.mxu0 %v22
  %642 = vmatprep.subr.mxu0 0.0
  %643 = vmatpush1.msra.mxu0 0.0
  %644 = vmatprep.subr.mxu0 0.0
  %645 = vmatpush1.msra.mxu0 0.0
  %646 = vmatprep.subr.mxu0 0.0
  %647 = vmatpush1.msra.mxu0 0.0
  %648 = vmatprep.subr.mxu0 0.0
  %649 = vmatpush1.msra.mxu0 0.0
  %650 = vmatprep.subr.mxu0 0.0
  %651 = vmatpush1.msra.mxu0 0.0
  %652 = vmatprep.subr.mxu0 0.0
  %653 = vmatpush1.msra.mxu0 0.0
  %654 = vmatprep.subr.mxu0 0.0
  %655 = vmatpush1.msra.mxu0 0.0
  %656 = vmatprep.subr.mxu0 0.0
  %657 = vmatpush1.msra.mxu0 0.0
  %658 = vmatprep.subr.mxu0 0.0
  %659 = vmatpush1.msra.mxu0 0.0
  %660 = vmatprep.subr.mxu0 0.0
  %661 = vmatpush1.msra.mxu0 0.0
  %662 = vmatprep.subr.mxu0 0.0
  %663 = vmatpush1.msra.mxu0 0.0
  %664 = vmatprep.subr.mxu0 0.0
  %665 = vmatpush1.msra.mxu0 0.0
  %666 = vmatprep.subr.mxu0 0.0
  %667 = vmatpush1.msra.mxu0 0.0
  %668 = vmatprep.subr.mxu0 0.0
  %669 = vmatpush1.msra.mxu0 0.0
  %670 = vmatprep.subr.mxu0 0.0
  %671 = vmatpush1.msra.mxu0 0.0
  %672 = vmatprep.subr.mxu0 0.0
  %673 = vmatpush1.msra.mxu0 0.0
  %674 = vmatprep.subr.mxu0 0.0
  %675 = vmatpush1.msra.mxu0 0.0
  %676 = vmatprep.subr.mxu0 0.0
  %677 = vmatpush1.msra.mxu0 0.0
  %678 = vmatprep.subr.mxu0 0.0
  %679 = vmatpush1.msra.mxu0 0.0
  %680 = vmatprep.subr.mxu0 0.0
  %681 = vmatpush1.msra.mxu0 0.0
  %682 = vmatprep.subr.mxu0 0.0
  %683 = vmatpush1.msra.mxu0 0.0
  %684 = vmatprep.subr.mxu0 0.0
  %685 = vmatpush1.msra.mxu0 0.0
  %686 = vmatprep.subr.mxu0 0.0
  %687 = vmatpush1.msra.mxu0 0.0
  %688 = vmatprep.subr.mxu0 0.0
  %689 = vmatpush1.msra.mxu0 0.0
  %690 = vmatprep.subr.mxu0 0.0
  %691 = vmatpush1.msra.mxu0 0.0
  %692 = vmatprep.subr.mxu0 0.0
  %693 = vmatpush1.msra.mxu0 0.0
  %694 = vmatprep.subr.mxu0 0.0
  %695 = vmatpush1.msra.mxu0 0.0
  %696 = vmatprep.subr.mxu0 0.0
  %697 = vmatpush1.msra.mxu0 0.0
  %698 = vmatprep.subr.mxu0 0.0
  %699 = vmatpush1.msra.mxu0 0.0
  %700 = vmatprep.subr.mxu0 0.0
  %701 = vmatpush1.msra.mxu0 0.0
  %702 = vmatprep.subr.mxu0 0.0
  %703 = vmatpush1.msra.mxu0 0.0
  %704 = vmatprep.mubr.f32.mxu0 0.0
  %705 = vmatmul.mubr.f32.gmra.mrb[0].mxu0 %v638
  %v706 = vpop.f32.mrb[0].mxu0
  %v707 = vadd.f32 0.0, %v706
  %v708 = vpop.f32.mrb[0].mxu0
  %709 = vdwg.mxu0
  %v710 = vadd.f32 %v20, %v707
  %v711 = vxor.u32 %v710, 2147483648
  %v712 = vmul.f32 %v711, 1.442695
  %v713 = vpow.pop %v712
  %v714 = vadd.f32 %v713, 1.0
  %v715 = vrcp.pop %v714
  %v716 = vmul.f32 1.0, %v715
  %v717 = vtanh.pop %v710
  %v718 = vmul.f32 %v716, %v626
  %720 = vrot.lane.b32.xlu0 %v717, 104
  %v721 = vpop.permute.xlu0 %720
  %v723 = vmul.f32 %v716, %v721
  %725 = vrot.lane.b32.xlu0 %v723, 8
  %v726 = vpop.permute.xlu0 %725
  %v728 = vadd.f32 %v718, %v726
  %v729 = vtanh.pop %v728
  %731 = vrot.lane.b32.xlu0 %v729, 8
  %v732 = vpop.permute.xlu0 %731
  %v734 = vmul.f32 %v716, %v732
  %736 = vrot.lane.b32.xlu0 %v734, 112
  %v737 = vpop.permute.xlu0 %736
  %739 = vst.msk [vmem:[#allocation2 + $0xc] sm:$0x3] %vm126, %v737
  %v740 = vsel %vm23, %v737, 0
  %742 = vmatprep.subr.mxu0 0.0
  %743 = vmatpush1.msra.mxu0 %v22
  %744 = vmatprep.subr.mxu0 0.0
  %745 = vmatpush1.msra.mxu0 0.0
  %746 = vmatprep.subr.mxu0 0.0
  %747 = vmatpush1.msra.mxu0 0.0
  %748 = vmatprep.subr.mxu0 0.0
  %749 = vmatpush1.msra.mxu0 0.0
  %750 = vmatprep.subr.mxu0 0.0
  %751 = vmatpush1.msra.mxu0 0.0
  %752 = vmatprep.subr.mxu0 0.0
  %753 = vmatpush1.msra.mxu0 0.0
  %754 = vmatprep.subr.mxu0 0.0
  %755 = vmatpush1.msra.mxu0 0.0
  %756 = vmatprep.subr.mxu0 0.0
  %757 = vmatpush1.msra.mxu0 0.0
  %758 = vmatprep.subr.mxu0 0.0
  %759 = vmatpush1.msra.mxu0 0.0
  %760 = vmatprep.subr.mxu0 0.0
  %761 = vmatpush1.msra.mxu0 0.0
  %762 = vmatprep.subr.mxu0 0.0
  %763 = vmatpush1.msra.mxu0 0.0
  %764 = vmatprep.subr.mxu0 0.0
  %765 = vmatpush1.msra.mxu0 0.0
  %766 = vmatprep.subr.mxu0 0.0
  %767 = vmatpush1.msra.mxu0 0.0
  %768 = vmatprep.subr.mxu0 0.0
  %769 = vmatpush1.msra.mxu0 0.0
  %770 = vmatprep.subr.mxu0 0.0
  %771 = vmatpush1.msra.mxu0 0.0
  %772 = vmatprep.subr.mxu0 0.0
  %773 = vmatpush1.msra.mxu0 0.0
  %774 = vmatprep.subr.mxu0 0.0
  %775 = vmatpush1.msra.mxu0 0.0
  %776 = vmatprep.subr.mxu0 0.0
  %777 = vmatpush1.msra.mxu0 0.0
  %778 = vmatprep.subr.mxu0 0.0
  %779 = vmatpush1.msra.mxu0 0.0
  %780 = vmatprep.subr.mxu0 0.0
  %781 = vmatpush1.msra.mxu0 0.0
  %782 = vmatprep.subr.mxu0 0.0
  %783 = vmatpush1.msra.mxu0 0.0
  %784 = vmatprep.subr.mxu0 0.0
  %785 = vmatpush1.msra.mxu0 0.0
  %786 = vmatprep.subr.mxu0 0.0
  %787 = vmatpush1.msra.mxu0 0.0
  %788 = vmatprep.subr.mxu0 0.0
  %789 = vmatpush1.msra.mxu0 0.0
  %790 = vmatprep.subr.mxu0 0.0
  %791 = vmatpush1.msra.mxu0 0.0
  %792 = vmatprep.subr.mxu0 0.0
  %793 = vmatpush1.msra.mxu0 0.0
  %794 = vmatprep.subr.mxu0 0.0
  %795 = vmatpush1.msra.mxu0 0.0
  %796 = vmatprep.subr.mxu0 0.0
  %797 = vmatpush1.msra.mxu0 0.0
  %798 = vmatprep.subr.mxu0 0.0
  %799 = vmatpush1.msra.mxu0 0.0
  %800 = vmatprep.subr.mxu0 0.0
  %801 = vmatpush1.msra.mxu0 0.0
  %802 = vmatprep.subr.mxu0 0.0
  %803 = vmatpush1.msra.mxu0 0.0
  %804 = vmatprep.subr.mxu0 0.0
  %805 = vmatpush1.msra.mxu0 0.0
  %806 = vmatprep.mubr.f32.mxu0 0.0
  %807 = vmatmul.mubr.f32.gmra.mrb[0].mxu0 %v740
  %v808 = vpop.f32.mrb[0].mxu0
  %v809 = vadd.f32 0.0, %v808
  %v810 = vpop.f32.mrb[0].mxu0
  %811 = vdwg.mxu0
  %v812 = vadd.f32 %v21, %v809
  %v813 = vxor.u32 %v812, 2147483648
  %v814 = vmul.f32 %v813, 1.442695
  %v815 = vpow.pop %v814
  %v816 = vadd.f32 %v815, 1.0
  %v817 = vrcp.pop %v816
  %v818 = vmul.f32 1.0, %v817
  %v819 = vtanh.pop %v812
  %v820 = vmul.f32 %v818, %v728
  %822 = vrot.lane.b32.xlu0 %v819, 104
  %v823 = vpop.permute.xlu0 %822
  %v825 = vmul.f32 %v818, %v823
  %827 = vrot.lane.b32.xlu0 %v825, 8
  %v828 = vpop.permute.xlu0 %827
  %v830 = vadd.f32 %v820, %v828
  %v831 = vtanh.pop %v830
  %833 = vrot.lane.b32.xlu0 %v831, 8
  %v834 = vpop.permute.xlu0 %833
  %v836 = vmul.f32 %v818, %v834
  %838 = vrot.lane.b32.xlu0 %v836, 112
  %v839 = vpop.permute.xlu0 %838
  %841 = vst.msk [vmem:[#allocation2 + $0xe] sm:$0x3] %vm126, %v839
  %v842 = vld [vmem:[%s2] sm:$0xff]
  %v843 = vld [vmem:[%s2 + $0x8] sm:$0x1]
  %v844 = vld [vmem:[#allocation2] sm:$0xff]
  %v845 = vld [vmem:[#allocation2 + $0x8] sm:$0xff]
  %v846 = vlaneseq
  %v847 = vshrl.u32 %v846, 7
  %v848 = vsub.s32 0, %v847
  %v849 = vrot.slane %v843, %v848
  %v851 = vsel %vm23, %v844, 0
  %v854 = vsel %vm23, %v845, 0
  %856 = vmatprep.subr.mxu0 0.0
  %857 = vmatpush1.msra.mxu0 %v842
  %858 = vmatprep.subr.mxu0 0.0
  %859 = vmatpush1.msra.mxu0 0.0
  %860 = vmatprep.subr.mxu0 0.0
  %861 = vmatpush1.msra.mxu0 0.0
  %862 = vmatprep.subr.mxu0 0.0
  %863 = vmatpush1.msra.mxu0 0.0
  %864 = vmatprep.subr.mxu0 0.0
  %865 = vmatpush1.msra.mxu0 0.0
  %866 = vmatprep.subr.mxu0 0.0
  %867 = vmatpush1.msra.mxu0 0.0
  %868 = vmatprep.subr.mxu0 0.0
  %869 = vmatpush1.msra.mxu0 0.0
  %870 = vmatprep.subr.mxu0 0.0
  %871 = vmatpush1.msra.mxu0 0.0
  %872 = vmatprep.subr.mxu0 0.0
  %873 = vmatpush1.msra.mxu0 0.0
  %874 = vmatprep.subr.mxu0 0.0
  %875 = vmatpush1.msra.mxu0 0.0
  %876 = vmatprep.subr.mxu0 0.0
  %877 = vmatpush1.msra.mxu0 0.0
  %878 = vmatprep.subr.mxu0 0.0
  %879 = vmatpush1.msra.mxu0 0.0
  %880 = vmatprep.subr.mxu0 0.0
  %881 = vmatpush1.msra.mxu0 0.0
  %882 = vmatprep.subr.mxu0 0.0
  %883 = vmatpush1.msra.mxu0 0.0
  %884 = vmatprep.subr.mxu0 0.0
  %885 = vmatpush1.msra.mxu0 0.0
  %886 = vmatprep.subr.mxu0 0.0
  %887 = vmatpush1.msra.mxu0 0.0
  %888 = vmatprep.subr.mxu0 0.0
  %889 = vmatpush1.msra.mxu0 0.0
  %890 = vmatprep.subr.mxu0 0.0
  %891 = vmatpush1.msra.mxu0 0.0
  %892 = vmatprep.subr.mxu0 0.0
  %893 = vmatpush1.msra.mxu0 0.0
  %894 = vmatprep.subr.mxu0 0.0
  %895 = vmatpush1.msra.mxu0 0.0
  %896 = vmatprep.subr.mxu0 0.0
  %897 = vmatpush1.msra.mxu0 0.0
  %898 = vmatprep.subr.mxu0 0.0
  %899 = vmatpush1.msra.mxu0 0.0
  %900 = vmatprep.subr.mxu0 0.0
  %901 = vmatpush1.msra.mxu0 0.0
  %902 = vmatprep.subr.mxu0 0.0
  %903 = vmatpush1.msra.mxu0 0.0
  %904 = vmatprep.subr.mxu0 0.0
  %905 = vmatpush1.msra.mxu0 0.0
  %906 = vmatprep.subr.mxu0 0.0
  %907 = vmatpush1.msra.mxu0 0.0
  %908 = vmatprep.subr.mxu0 0.0
  %909 = vmatpush1.msra.mxu0 0.0
  %910 = vmatprep.subr.mxu0 0.0
  %911 = vmatpush1.msra.mxu0 0.0
  %912 = vmatprep.subr.mxu0 0.0
  %913 = vmatpush1.msra.mxu0 0.0
  %914 = vmatprep.subr.mxu0 0.0
  %915 = vmatpush1.msra.mxu0 0.0
  %916 = vmatprep.subr.mxu0 0.0
  %917 = vmatpush1.msra.mxu0 0.0
  %918 = vmatprep.subr.mxu0 0.0
  %919 = vmatpush1.msra.mxu0 0.0
  %920 = vmatprep.mubr.f32.mxu0 0.0
  %921 = vmatmul.mubr.f32.gmra.mrb[0].mxu0 %v851
  %v922 = vpop.f32.mrb[0].mxu0
  %v923 = vadd.f32 %v849, %v922
  %v924 = vpop.f32.mrb[0].mxu0
  %925 = vmatprep.mubr.f32.mxu0 0.0
  %926 = vmatmul.mubr.f32.gmra.mrb[0].mxu0 %v854
  %v927 = vpop.f32.mrb[0].mxu0
  %v928 = vadd.f32 %v849, %v927
  %v929 = vpop.f32.mrb[0].mxu0
  %930 = vdwg.mxu0
  %v933 = vcombine.high %v923, %v923
  %v935 = vunpack.c.l.s4 1983009808
  %v936 = vunpack.c.0.s8 %v935
  %v937 = vlaneseq
  %v938 = vshrl.u32 %v937, 7
  %v939 = vsub.s32 %v936, %v938
  %v940 = vrot.slane %v923, %v939
  %v942 = vunpack.c.l.s4 1983009808
  %v943 = vunpack.c.0.s8 %v942
  %v944 = vlaneseq
  %v945 = vshrl.u32 %v944, 7
  %v946 = vsub.s32 %v943, %v945
  %v947 = vrot.slane %v933, %v946
  %v948 = vcombine.high %v940, %v940
  %v949 = vcombine.high %v947, %v947
  %v950 = vcombine.high %v928, %v928
  %v952 = vunpack.c.l.s4 1983009808
  %v953 = vunpack.c.0.s8 %v952
  %v954 = vlaneseq
  %v955 = vshrl.u32 %v954, 7
  %v956 = vsub.s32 %v953, %v955
  %v957 = vrot.slane %v928, %v956
  %v959 = vunpack.c.l.s4 1983009808
  %v960 = vunpack.c.0.s8 %v959
  %v961 = vlaneseq
  %v962 = vshrl.u32 %v961, 7
  %v963 = vsub.s32 %v960, %v962
  %v964 = vrot.slane %v950, %v963
  %v965 = vcombine.high %v957, %v957
  %v966 = vcombine.high %v964, %v964
  %vm975 = vcmask 25600
  %976 = vst.msk [vmem:[%s3] sm:$0x3] %vm975, %v940
  %977 = vst.msk [vmem:[%s3 + $0x2] sm:$0x3] %vm975, %v948
  %978 = vst.msk [vmem:[%s3 + $0x4] sm:$0x3] %vm975, %v947
  %979 = vst.msk [vmem:[%s3 + $0x6] sm:$0x3] %vm975, %v949
  %980 = vst.msk [vmem:[%s3 + $0x8] sm:$0x3] %vm975, %v957
  %981 = vst.msk [vmem:[%s3 + $0xa] sm:$0x3] %vm975, %v965
  %982 = vst.msk [vmem:[%s3 + $0xc] sm:$0x3] %vm975, %v964
  %983 = vst.msk [vmem:[%s3 + $0xe] sm:$0x3] %vm975, %v966
  // Predicated region
  $region14: #{lstm_forward.1} parent=0 // pred_check
    _
  $region15: #{lstm_forward.1} parent=0 // pred_check_branch
    %985 = sbr.rel (0) target = $region17
  $region16: #{lstm_forward.1} parent=0 // pred_region
    _
  $region17: #{lstm_forward.1} parent=0 // pred_fallthru
    _
  // Predicated region
  $region18: #{lstm_forward.1} parent=0 // pred_check
    _
  $region19: #{lstm_forward.1} parent=0 // pred_check_branch
    %987 = sbr.rel (0) target = $region21
  $region20: #{lstm_forward.1} parent=0 // pred_region
    _
  $region21: #{lstm_forward.1} parent=0 // pred_fallthru
    _

</llo_original>
